<compile_context>
chip_gen: v5e
topology: v5e:2x2
jax: 0.10.0
libtpu: 0.0.40
codegen_flags: <defaults>
</compile_context>

<pallas_src>
import functools

import jax
import jax.numpy as jnp
from jax.experimental import pallas as pl
from jax.experimental.pallas import tpu as pltpu


# ---------------------------------------------------------------------------
# Path 1: small fused kernel (all losses, full blocks, one invocation)
# ---------------------------------------------------------------------------
def _make_small_fused_kernel(num_losses):
    """Kernel computing sum_l w[l] * mean_CE(logits_l, labels_l).

    Ref layout (inputs..., output):
      refs[0]        : SMEM (L,)   f32 weights
      refs[1 + 2l]   : VMEM (B, C) logits for loss l (native dtype, e.g. bf16)
      refs[2 + 2l]   : VMEM (B, 1) int32 class indices for loss l
      refs[-1]       : SMEM (1, 1) f32 result (weighted sum of mean CEs)
    """

    def kernel(*refs):
        w_ref = refs[0]
        out_ref = refs[-1]

        iota_cache = {}      # (B, C) -> column-index iota (hoisted, built once)
        acc_by_rows = {}     # B -> (B, 1) f32 accumulated weighted per-row CE

        for l in range(num_losses):
            logits_ref = refs[1 + 2 * l]
            labels_ref = refs[2 + 2 * l]

            # Up-cast to f32 in-register (the DMA stays in native dtype).
            logits = logits_ref[...].astype(jnp.float32)       # (B, C)
            labels = labels_ref[...]                           # (B, 1) int32
            B, C = logits.shape

            # Hoisted / cached iota: one VALU fill per distinct shape, not per loss.
            if (B, C) not in iota_cache:
                iota_cache[(B, C)] = jax.lax.broadcasted_iota(jnp.int32, (B, C), 1)
            col = iota_cache[(B, C)]

            # Single pass: shift once, reuse for both exp() and the target pick.
            m = jnp.max(logits, axis=-1, keepdims=True)         # (B, 1)
            shifted = logits - m                                # (B, C)
            lse = jnp.log(jnp.sum(jnp.exp(shifted), axis=-1, keepdims=True))
            picked = jnp.sum(jnp.where(col == labels, shifted, 0.0),
                             axis=-1, keepdims=True)            # (B, 1)

            # Weighted per-row CE, accumulated as a vector (no per-loss mean).
            weighted = w_ref[l] * (lse - picked)                # (B, 1)
            if B in acc_by_rows:
                acc_by_rows[B] = acc_by_rows[B] + weighted
            else:
                acc_by_rows[B] = weighted

        # One final cross-sublane reduction (per distinct batch size).
        total = jnp.float32(0.0)
        for B, vec in acc_by_rows.items():
            total = total + jnp.sum(vec) * jnp.float32(1.0 / B)
        out_ref[0, 0] = total

    return kernel


def _multi_loss_weighted_sum_small(weights, per_loss_args):
    """weights: (L,) f32.  per_loss_args: [logits_0, labels_0, logits_1, ...]."""
    num_losses = len(per_loss_args) // 2

    in_specs = [pl.BlockSpec(memory_space=pltpu.SMEM)]           # weights
    for _ in range(num_losses):
        in_specs.append(pl.BlockSpec(memory_space=pltpu.VMEM))   # logits_l
        in_specs.append(pl.BlockSpec(memory_space=pltpu.VMEM))   # labels_l

    out = pl.pallas_call(
        _make_small_fused_kernel(num_losses),
        out_shape=jax.ShapeDtypeStruct((1, 1), jnp.float32),
        in_specs=in_specs,
        out_specs=pl.BlockSpec(memory_space=pltpu.SMEM),
    )(weights, *per_loss_args)
    return out[0, 0]


# ---------------------------------------------------------------------------
# Path 2: gridded online-logsumexp kernel (one loss, vocab-scale capable)
# ---------------------------------------------------------------------------
def _gridded_ce_kernel(logits_ref, labels_ref, out_ref, m_ref, s_ref, p_ref, *, tc):
    """Per-(B-block) online logsumexp CE; C grid axis is the (last) reduction axis.

    logits_ref : VMEM (TB, TC)  native dtype
    labels_ref : VMEM (TB, 1)   int32 (index_map ignores the C axis)
    out_ref    : VMEM (TB, 1)   f32 per-row CE (written on last C step)
    m/s/p_ref  : VMEM (TB, 1)   f32 running max / running sum-exp / picked logit
    """
    ci = pl.program_id(1)

    @pl.when(ci == 0)
    def _():
        m_ref[...] = jnp.full_like(m_ref, -jnp.inf)
        s_ref[...] = jnp.zeros_like(s_ref)
        p_ref[...] = jnp.zeros_like(p_ref)

    x = logits_ref[...].astype(jnp.float32)                      # (TB, TC)
    labels_local = labels_ref[...] - ci * tc                     # (TB, 1)

    blk_max = jnp.max(x, axis=-1, keepdims=True)                 # (TB, 1)
    m_new = jnp.maximum(m_ref[...], blk_max)
    s_ref[...] = (s_ref[...] * jnp.exp(m_ref[...] - m_new)
                  + jnp.sum(jnp.exp(x - m_new), axis=-1, keepdims=True))

    # One-hot pick of the target logit if it lives in this C block.
    col = jax.lax.broadcasted_iota(jnp.int32, x.shape, 1)        # (TB, TC)
    p_ref[...] = p_ref[...] + jnp.sum(jnp.where(col == labels_local, x, 0.0),
                                      axis=-1, keepdims=True)
    m_ref[...] = m_new

    @pl.when(ci == pl.num_programs(1) - 1)
    def _():
        out_ref[...] = m_ref[...] + jnp.log(s_ref[...]) - p_ref[...]


def _gridded_per_row_ce(logits, labels_2d, tb, tc):
    """Returns (B, 1) f32 per-row cross-entropy using the gridded pipeline."""
    B, C = logits.shape
    nb, nc = B // tb, C // tc
    kernel = functools.partial(_gridded_ce_kernel, tc=tc)
    return pl.pallas_call(
        kernel,
        out_shape=jax.ShapeDtypeStruct((B, 1), jnp.float32),
        grid=(nb, nc),
        in_specs=[
            pl.BlockSpec((tb, tc), lambda bi, ci: (bi, ci)),     # logits tile
            pl.BlockSpec((tb, 1), lambda bi, ci: (bi, 0)),       # labels: ignore C
        ],
        out_specs=pl.BlockSpec((tb, 1), lambda bi, ci: (bi, 0)), # per-row CE
        scratch_shapes=[pltpu.VMEM((tb, 1), jnp.float32)] * 3,
        compiler_params=pltpu.CompilerParams(
            dimension_semantics=("parallel", "arbitrary"),       # B parallel, C last
            vmem_limit_bytes=32 << 20,                           # explicit, v7x-safe
        ),
    )(logits, labels_2d)


# ---------------------------------------------------------------------------
# Wrapper: mirror of Loss.forward for the weighted_sum / CrossEntropyLoss config
# ---------------------------------------------------------------------------
_TB_CANDIDATES = (512, 256, 128, 64, 32, 16, 8)
_TC_CANDIDATES = (4096, 2048, 1024, 512, 256, 128)


def _pick_tile(n, candidates, cap):
    for t in candidates:
        if t <= cap and t <= n and n % t == 0:
            return t
    return None


def loss_forward(model_outputs, targets, loss_inputs, weights, *,
                 gridded_bytes_threshold=2 << 20, tb_cap=256, tc_cap=2048):
    """result_loss = sum_l weights[l] * CrossEntropyLoss(outputs_l, labels_l).

    tb_cap/tc_cap default to the v7x-safe sizing (64 MiB VMEM part); on
    v5e/v6e (128 MiB VMEM) larger caps (e.g. 512/4096) amortize per-step
    overhead further since the kernel is HBM-bandwidth-bound at scale.
    """
    small_weights, small_args, gridded = [], [], []
    for (output_id, target_id), wl in zip(loss_inputs, weights):
        logits = model_outputs[output_id]                        # native dtype, no cast
        labels = targets[target_id].astype(jnp.int32).reshape(-1, 1)
        B, C = logits.shape
        tb = _pick_tile(B, _TB_CANDIDATES, tb_cap)
        tc = _pick_tile(C, _TC_CANDIDATES, tc_cap)
        nbytes = logits.size * logits.dtype.itemsize
        if nbytes >= gridded_bytes_threshold and tb is not None and tc is not None:
            gridded.append((float(wl), logits, labels, tb, tc))
        else:
            small_weights.append(float(wl))
            small_args.extend([logits, labels])

    total = jnp.float32(0.0)
    if small_args:
        w = jnp.asarray(small_weights, dtype=jnp.float32)
        total = total + _multi_loss_weighted_sum_small(w, small_args)
    for wl, logits, labels, tb, tc in gridded:
        per_row = _gridded_per_row_ce(logits, labels, tb, tc)    # (B, 1) f32
        total = total + wl * (jnp.sum(per_row[:, 0]) / logits.shape[0])
    return total


# ---------------------------------------------------------------------------
# Self-test
# ---------------------------------------------------------------------------
if __name__ == "__main__":
    key = jax.random.PRNGKey(0)
    k1, k2, k3, k4, k5, k6, k7, k8 = jax.random.split(key, 8)

    loss_inputs = [("start_output", "start_label"), ("end_output", "end_label")]
    weights = [0.5, 0.5]

    def ce_ref(logits, labels):
        logp = jax.nn.log_softmax(logits.astype(jnp.float32), axis=-1)
        return -jnp.mean(jnp.take_along_axis(logp, labels[:, None], axis=-1))

    def weighted_ref(model_outputs, targets):
        return sum(w * ce_ref(model_outputs[o], targets[t])
                   for w, (o, t) in zip(weights, loss_inputs))

    # --- Test 1: small fused path (B=8, C=128, bf16 logits) -----------------
    B1, C1 = 8, 128
    mo1 = {
        "start_output": jax.random.normal(k1, (B1, C1), jnp.float32).astype(jnp.bfloat16),
        "end_output":   jax.random.normal(k2, (B1, C1), jnp.float32).astype(jnp.bfloat16),
    }
    tg1 = {
        "start_label": jax.random.randint(k3, (B1,), 0, C1, dtype=jnp.int32),
        "end_label":   jax.random.randint(k4, (B1,), 0, C1, dtype=jnp.int32),
    }
    res1 = jax.block_until_ready(loss_forward(mo1, tg1, loss_inputs, weights))
    ref1 = weighted_ref(mo1, tg1)
    assert jnp.allclose(res1, ref1, rtol=1e-4, atol=1e-4), (res1, ref1)

    # --- Test 2: gridded online-logsumexp path (B=32, C=512, forced) --------
    # Small tile caps force a (2, 2) grid so the pl.when init/finalize, the
    # online logsumexp carry, and the C-invariant label fetch are exercised.
    B2, C2 = 32, 512
    mo2 = {
        "start_output": jax.random.normal(k5, (B2, C2), jnp.float32).astype(jnp.bfloat16),
        "end_output":   jax.random.normal(k6, (B2, C2), jnp.float32).astype(jnp.bfloat16),
    }
    tg2 = {
        "start_label": jax.random.randint(k7, (B2,), 0, C2, dtype=jnp.int32),
        "end_label":   jax.random.randint(k8, (B2,), 0, C2, dtype=jnp.int32),
    }
    res2 = jax.block_until_ready(
        loss_forward(mo2, tg2, loss_inputs, weights,
                     gridded_bytes_threshold=0, tb_cap=16, tc_cap=256))
    ref2 = weighted_ref(mo2, tg2)
    assert jnp.allclose(res2, ref2, rtol=1e-4, atol=1e-4), (res2, ref2)

    print("KERNEL_OK")
</pallas_src>

<mosaic_0001>
module attributes {stable_mosaic.version = 11 : i64} {
  func.func @kernel(%arg0: memref<2xf32, #tpu.memory_space<smem>>, %arg1: memref<8x128xbf16, #tpu.memory_space<vmem>>, %arg2: memref<8x1xi32, #tpu.memory_space<vmem>>, %arg3: memref<8x128xbf16, #tpu.memory_space<vmem>>, %arg4: memref<8x1xi32, #tpu.memory_space<vmem>>, %arg5: memref<1x1xf32, #tpu.memory_space<smem>>) attributes {dimension_semantics = [], scalar_prefetch = 0 : i64, scratch_operands = 0 : i64, tpu.core_type = #tpu.core_type<tc>} {
    %c0 = arith.constant 0 : index
    %c0_0 = arith.constant 0 : index
    %0 = vector.load %arg1[%c0, %c0_0] : memref<8x128xbf16, #tpu.memory_space<vmem>>, vector<8x128xbf16>
    %1 = arith.extf %0 : vector<8x128xbf16> to vector<8x128xf32>
    %c0_1 = arith.constant 0 : index
    %c0_2 = arith.constant 0 : index
    %2 = vector.load %arg2[%c0_1, %c0_2] : memref<8x1xi32, #tpu.memory_space<vmem>>, vector<8x1xi32>
    %3 = tpu.iota {dimensions = array<i32: 1>} : vector<8x128xi32>
    %cst = arith.constant dense<0xFF800000> : vector<8xf32>
    %4 = vector.multi_reduction <maximumf>, %1, %cst [1] : vector<8x128xf32> to vector<8xf32>
    %5 = vector.shape_cast %4 : vector<8xf32> to vector<8x1xf32>
    %6 = vector.broadcast %5 : vector<8x1xf32> to vector<8x128xf32>
    %7 = arith.subf %1, %6 : vector<8x128xf32>
    %8 = math.exp %7 : vector<8x128xf32>
    %cst_3 = arith.constant dense<0.000000e+00> : vector<8xf32>
    %9 = vector.multi_reduction <add>, %8, %cst_3 [1] : vector<8x128xf32> to vector<8xf32>
    %10 = vector.shape_cast %9 : vector<8xf32> to vector<8x1xf32>
    %11 = math.log %10 : vector<8x1xf32>
    %12 = vector.broadcast %2 : vector<8x1xi32> to vector<8x128xi32>
    %13 = arith.cmpi eq, %3, %12 : vector<8x128xi32>
    %cst_4 = arith.constant 0.000000e+00 : f32
    %14 = vector.broadcast %cst_4 : f32 to vector<8x128xf32>
    %15 = arith.select %13, %7, %14 : vector<8x128xi1>, vector<8x128xf32>
    %cst_5 = arith.constant dense<0.000000e+00> : vector<8xf32>
    %16 = vector.multi_reduction <add>, %15, %cst_5 [1] : vector<8x128xf32> to vector<8xf32>
    %17 = vector.shape_cast %16 : vector<8xf32> to vector<8x1xf32>
    %c0_6 = arith.constant 0 : index
    %18 = memref.load %arg0[%c0_6] : memref<2xf32, #tpu.memory_space<smem>>
    %19 = arith.subf %11, %17 : vector<8x1xf32>
    %20 = vector.broadcast %18 : f32 to vector<8x1xf32>
    %21 = arith.mulf %20, %19 : vector<8x1xf32>
    %c0_7 = arith.constant 0 : index
    %c0_8 = arith.constant 0 : index
    %22 = vector.load %arg3[%c0_7, %c0_8] : memref<8x128xbf16, #tpu.memory_space<vmem>>, vector<8x128xbf16>
    %23 = arith.extf %22 : vector<8x128xbf16> to vector<8x128xf32>
    %c0_9 = arith.constant 0 : index
    %c0_10 = arith.constant 0 : index
    %24 = vector.load %arg4[%c0_9, %c0_10] : memref<8x1xi32, #tpu.memory_space<vmem>>, vector<8x1xi32>
    %cst_11 = arith.constant dense<0xFF800000> : vector<8xf32>
    %25 = vector.multi_reduction <maximumf>, %23, %cst_11 [1] : vector<8x128xf32> to vector<8xf32>
    %26 = vector.shape_cast %25 : vector<8xf32> to vector<8x1xf32>
    %27 = vector.broadcast %26 : vector<8x1xf32> to vector<8x128xf32>
    %28 = arith.subf %23, %27 : vector<8x128xf32>
    %29 = math.exp %28 : vector<8x128xf32>
    %cst_12 = arith.constant dense<0.000000e+00> : vector<8xf32>
    %30 = vector.multi_reduction <add>, %29, %cst_12 [1] : vector<8x128xf32> to vector<8xf32>
    %31 = vector.shape_cast %30 : vector<8xf32> to vector<8x1xf32>
    %32 = math.log %31 : vector<8x1xf32>
    %33 = vector.broadcast %24 : vector<8x1xi32> to vector<8x128xi32>
    %34 = arith.cmpi eq, %3, %33 : vector<8x128xi32>
    %cst_13 = arith.constant 0.000000e+00 : f32
    %35 = vector.broadcast %cst_13 : f32 to vector<8x128xf32>
    %36 = arith.select %34, %28, %35 : vector<8x128xi1>, vector<8x128xf32>
    %cst_14 = arith.constant dense<0.000000e+00> : vector<8xf32>
    %37 = vector.multi_reduction <add>, %36, %cst_14 [1] : vector<8x128xf32> to vector<8xf32>
    %38 = vector.shape_cast %37 : vector<8xf32> to vector<8x1xf32>
    %c1 = arith.constant 1 : index
    %39 = memref.load %arg0[%c1] : memref<2xf32, #tpu.memory_space<smem>>
    %40 = arith.subf %32, %38 : vector<8x1xf32>
    %41 = vector.broadcast %39 : f32 to vector<8x1xf32>
    %42 = arith.mulf %41, %40 : vector<8x1xf32>
    %43 = arith.addf %21, %42 : vector<8x1xf32>
    %44 = vector.shape_cast %43 : vector<8x1xf32> to vector<1x8x1xf32>
    %cst_15 = arith.constant dense<0.000000e+00> : vector<1xf32>
    %45 = vector.multi_reduction <add>, %44, %cst_15 [1, 2] : vector<1x8x1xf32> to vector<1xf32>
    %46 = vector.shape_cast %45 : vector<1xf32> to vector<1x1x1xf32>
    %47 = vector.extract %46[0, 0, 0] : f32 from vector<1x1x1xf32>
    %cst_16 = arith.constant 1.250000e-01 : f32
    %48 = arith.mulf %47, %cst_16 : f32
    %cst_17 = arith.constant 0.000000e+00 : f32
    %49 = arith.addf %cst_17, %48 : f32
    %c0_18 = arith.constant 0 : index
    %c0_19 = arith.constant 0 : index
    %50 = memref.load %arg5[%c0_18, %c0_19] : memref<1x1xf32, #tpu.memory_space<smem>>
    memref.store %49, %arg5[%c0_18, %c0_19] : memref<1x1xf32, #tpu.memory_space<smem>>
    return
  }
}

</mosaic_0001>

<llo_original>
// kernel: tpu_custom_call.1
$region0: #{tpu_custom_call.1}
  #allocation0 [shape = 'u32[]', space=smem, size = 0x4, offset = 0x4, fixed_abs, tag = 'smem constant byte address 0x4 - core index']
  #allocation1 [shape = 'u32[72,128]{1,0:T(1,128)}', space=vmem, size = 0x9000, scoped, tag = 'internal scratch']
  %s0 = inlined_call_operand.vmem [shape: f32[2], index: 0, kind: input, shape index: {}]
  %s1 = inlined_call_operand.vmem [shape: bf16[8,128], index: 1, kind: input, shape index: {}]
  %s2 = inlined_call_operand.vmem [shape: s32[8,1], index: 2, kind: input, shape index: {}]
  %s3 = inlined_call_operand.vmem [shape: bf16[8,128], index: 3, kind: input, shape index: {}]
  %s4 = inlined_call_operand.vmem [shape: s32[8,1], index: 4, kind: input, shape index: {}]
  %s5 = inlined_call_operand.hbm [shape: f32[1,1], index: 5, kind: output, shape index: {}]
  %s6 = sld [smem:[#allocation0]]
  $region34: #{tpu_custom_call.1} parent=0
    _
  %s8 = ssub.s32 1, %s6
  %s9 = scalar_select 0, %s8, %s6
  $region1: #{tpu_custom_call.1} parent=0
    #allocation2 [shape = 'u8[512]{0}', space=smem, size = 0x200, scoped, tag = 'input window, operand 0, single buffered']
    #allocation3 [shape = 's32[1]{0}', space=sflag, size = 0x4, scoped, tag = 'scoped memory for tpu_custom_call.1']
    #allocation4 [shape = 's32[1]{0}', space=sflag, size = 0x4, scoped, tag = 'scoped memory for tpu_custom_call.1']
    #allocation5 [shape = 'u8[512]{0}', space=smem, size = 0x200, scoped, tag = 'output window, operand 0, single buffered']
    %10 = vsyncpa [#allocation4], 0
    %11 = vsyncpa [#allocation3], 0
    // Predicated region
    $region2: #{tpu_custom_call.1} parent=1 // pred_check
      _
    $region3: #{tpu_custom_call.1} parent=1 // pred_check_branch
      %13 = sbr.rel (0) target = $region5
    $region4: #{tpu_custom_call.1} parent=1 // pred_region
      %15 = vsyncadd [#allocation4], 0
      %s17 = sshll.u32 %s0, 4
      %s18 = int_to_ptr.vmem [resolvable:$true] %s17
      %20 = dma.vmem_to_smem %s18, 16, [#allocation2], [#allocation4]
    $region5: #{tpu_custom_call.1} parent=1 // pred_fallthru
      _
    // Predicated region
    $region6: #{tpu_custom_call.1} parent=1 // pred_check
      _
    $region7: #{tpu_custom_call.1} parent=1 // pred_check_branch
      %22 = sbr.rel (0) target = $region9
    $region8: #{tpu_custom_call.1} parent=1 // pred_region
      _
    $region9: #{tpu_custom_call.1} parent=1 // pred_fallthru
      _
    // Predicated region
    $region10: #{tpu_custom_call.1} parent=1 // pred_check
      _
    $region11: #{tpu_custom_call.1} parent=1 // pred_check_branch
      %24 = sbr.rel (0) target = $region13
    $region12: #{tpu_custom_call.1} parent=1 // pred_region
      _
    $region13: #{tpu_custom_call.1} parent=1 // pred_fallthru
      _
    // Predicated region
    $region14: #{tpu_custom_call.1} parent=1 // pred_check
      _
    $region15: #{tpu_custom_call.1} parent=1 // pred_check_branch
      %26 = sbr.rel (0) target = $region17
    $region16: #{tpu_custom_call.1} parent=1 // pred_region
      _
    $region17: #{tpu_custom_call.1} parent=1 // pred_fallthru
      _
    // Predicated region
    $region18: #{tpu_custom_call.1} parent=1 // pred_check
      _
    $region19: #{tpu_custom_call.1} parent=1 // pred_check_branch
      %28 = sbr.rel (0) target = $region21
    $region20: #{tpu_custom_call.1} parent=1 // pred_region
      _
    $region21: #{tpu_custom_call.1} parent=1 // pred_fallthru
      _
    // Predicated region
    $region22: #{tpu_custom_call.1} parent=1 // pred_check
      _
    $region23: #{tpu_custom_call.1} parent=1 // pred_check_branch
      %30 = sbr.rel (0) target = $region25
    $region24: #{tpu_custom_call.1} parent=1 // pred_region
      %32 = dma.done [#allocation4], 16
    $region25: #{tpu_custom_call.1} parent=1 // pred_fallthru
      _
    %33 = sfence
    %v34 = vld [vmem:[%s1] sm:$0xf]
    %v35 = vunpack.c.l.bf16 %v34
    %v36 = vld [vmem:[%s2] sm:$0xff]
    %v37 = vlaneseq
    %v38 = vand.u32 %v37, 127
    %39 = vmax.xlane.f32.xlu0 %v35
    %v40 = vpop.xlane.xlu0 %39
    %v41 = vsub.f32 %v35, %v40
    %v42 = vmul.f32 %v41, 1.442695
    %v43 = vpow.pop %v42
    %44 = vadd.xlane.f32.xlu0 %v43
    %v45 = vpop.xlane.xlu0 %44
    %v46 = vlog2.pop %v45
    %v47 = vmul.f32 %v46, 0.6931472
    %48 = vset.pattern.permute.xlu0 0
    %49 = vperm.xlu0 %48, %v36
    %v50 = vpop.permute.xlu0 %49
    %vm51 = vcmp.eq.s32.totalorder %v38, %v50
    %v52 = vsel %vm51, %v41, 0.0
    %53 = vadd.xlane.f32.xlu0 %v52
    %v54 = vpop.xlane.xlu0 %53
    %s55 = sld [smem:[#allocation2]]
    %v56 = vsub.f32 %v47, %v54
    %v57 = vstv %s55
    %v58 = vmul.f32 %v57, %v56
    %v59 = vld [vmem:[%s3] sm:$0xf]
    %v60 = vunpack.c.l.bf16 %v59
    %v61 = vld [vmem:[%s4] sm:$0xff]
    %62 = vmax.xlane.f32.xlu0 %v60
    %v63 = vpop.xlane.xlu0 %62
    %v64 = vsub.f32 %v60, %v63
    %v65 = vmul.f32 %v64, 1.442695
    %v66 = vpow.pop %v65
    %67 = vadd.xlane.f32.xlu0 %v66
    %v68 = vpop.xlane.xlu0 %67
    %v69 = vlog2.pop %v68
    %v70 = vmul.f32 %v69, 0.6931472
    %71 = vset.pattern.permute.xlu0 0
    %72 = vperm.xlu0 %71, %v61
    %v73 = vpop.permute.xlu0 %72
    %vm74 = vcmp.eq.s32.totalorder %v38, %v73
    %v75 = vsel %vm74, %v64, 0.0
    %76 = vadd.xlane.f32.xlu0 %v75
    %v77 = vpop.xlane.xlu0 %76
    %s78 = sld [smem:[#allocation2 + $0x1]]
    %v79 = vsub.f32 %v70, %v77
    %v80 = vstv %s78
    %v81 = vmul.f32 %v80, %v79
    %v82 = vadd.f32 %v58, %v81
    %vm83 = vcmask 7168
    %v84 = vsel %vm83, %v82, 0.0
    %85 = vadd.xlane.f32.xlu0 %v84
    %v86 = vpop.xlane.xlu0 %85
    %v87 = vrot.slane %v86, 4
    %v88 = vadd.f32 %v86, %v87
    %v89 = vrot.slane %v88, 2
    %v90 = vadd.f32 %v88, %v89
    %v91 = vrot.slane %v90, 1
    %v92 = vadd.f32 %v90, %v91
    %s93 = vtos %v92
    %s94 = smul.f32 %s93, 0.125
    %s95 = sadd.f32 %s94, 0.0
    %s96 = scalar_lea.smem [#allocation5], 0
    %97 = sst [smem:[%s96]] %s95
    // Predicated region
    $region26: #{tpu_custom_call.1} parent=1 // pred_check
      _
    $region27: #{tpu_custom_call.1} parent=1 // pred_check_branch
      %99 = sbr.rel (0) target = $region29
    $region28: #{tpu_custom_call.1} parent=1 // pred_region
      %101 = vsyncadd [#allocation3], 0
      %s103 = sshll.u32 %s5, 4
      %s104 = int_to_ptr.hbm [resolvable:$true] %s103
      %106 = dma.smem_to_hbm [#allocation5], 16, %s104, [#allocation3]
    $region29: #{tpu_custom_call.1} parent=1 // pred_fallthru
      _
    // Predicated region
    $region30: #{tpu_custom_call.1} parent=1 // pred_check
      _
    $region31: #{tpu_custom_call.1} parent=1 // pred_check_branch
      %108 = sbr.rel (0) target = $region33
    $region32: #{tpu_custom_call.1} parent=1 // pred_region
      %110 = dma.done [#allocation3], 16
    $region33: #{tpu_custom_call.1} parent=1 // pred_fallthru
      _
    %111 = sfence
    %112 = vsyncpa [#allocation3], 1
    %113 = vsyncpa [#allocation4], 1

</llo_original>
